<compile_context>
chip_gen: v5e
topology: v5e:2x2
jax: 0.10.0
libtpu: 0.0.40
codegen_flags: <defaults>
</compile_context>

<pallas_src>
import math
import functools

import jax
import jax.numpy as jnp
from jax.experimental import pallas as pl
from jax.experimental.pallas import tpu as pltpu


def make_sinusoidal_pe(max_len: int, d_model: int) -> jnp.ndarray:
    """Deterministically build the PE buffer exactly like the PyTorch __init__."""
    position = jnp.arange(0, max_len, dtype=jnp.float32)[:, None]                 # (max_len, 1)
    div_term = jnp.exp(
        jnp.arange(0, d_model, 2, dtype=jnp.float32) * -(math.log(10000.0) / d_model)
    )                                                                             # (d_model//2,)
    angles = position * div_term                                                  # (max_len, d_model//2)
    pe = jnp.zeros((max_len, d_model), dtype=jnp.float32)
    pe = pe.at[:, 0::2].set(jnp.sin(angles))
    pe = pe.at[:, 1::2].set(jnp.cos(angles))
    return pe


def _pe_add_kernel(x_ref, pe_ref, o_ref):
    # Pure lane-aligned elementwise add (pe broadcasts over the batch rows if present).
    o_ref[...] = (x_ref[...] + pe_ref[...]).astype(o_ref.dtype)


def _pe_add_dropout_kernel(dropout_p, x_ref, pe_ref, u_ref, o_ref):
    # Inverted dropout matching nn.Dropout(p) training semantics.
    val = x_ref[...] + pe_ref[...]
    keep = u_ref[...] >= jnp.float32(dropout_p)
    scale = jnp.asarray(1.0 / (1.0 - dropout_p), dtype=val.dtype)
    o_ref[...] = jnp.where(keep, val * scale, jnp.zeros_like(val)).astype(o_ref.dtype)


def _choose_tile(total, row_elems, itemsize, *, align, target_bytes=1 << 20):
    """Largest tile length (multiple of `align`, dividing `total`) whose block is ~target_bytes.

    Falls back to the full axis (always legal: block dim == full array dim)."""
    if total < align or total * row_elems * itemsize <= 2 * target_bytes:
        return total
    t = (target_bytes // (row_elems * itemsize)) // align * align
    t = int(min(max(t, align), total))
    while t > align and total % t != 0:
        t -= align
    if t < align or total % t != 0:
        return total
    return t


def positional_encoding_forward(x, pe, *, dropout_p=0.1, training=False, rng_key=None):
    """Pallas implementation of PositionalEncoding.forward.

    x:  (B, S, D)
    pe: (max_len, D) float32 buffer
    """
    B, S, D = x.shape
    itemsize = jnp.dtype(x.dtype).itemsize
    pe_s = pe[:S].astype(x.dtype)                       # pe[:, :x.size(1)], pre-cast to x dtype

    use_dropout = bool(training) and float(dropout_p) > 0.0
    if use_dropout and float(dropout_p) >= 1.0:
        return jnp.zeros_like(x)                        # nn.Dropout(p=1) zeroes everything
    if use_dropout:
        if rng_key is None:
            rng_key = jax.random.PRNGKey(0)
        # TODO(synk): on real TPU an in-kernel pltpu.prng_random_bits stream would avoid this
        # extra HBM read, but it has no interpret/CPU lowering, so the mask source is host-side.
        u = jax.random.uniform(rng_key, x.shape, dtype=jnp.float32)

    if D % 128 == 0:
        # Lane-dense 3-D path: tile the sequence axis, squeeze the batch dim, keep the pe tile
        # resident in VMEM across the inner batch axis.
        ts = _choose_tile(S, D, itemsize, align=8)
        grid = (S // ts, B)
        x_spec = pl.BlockSpec((None, ts, D), lambda s, b: (b, s, 0))
        pe_spec = pl.BlockSpec((ts, D), lambda s, b: (s, 0))
        u_spec = pl.BlockSpec((None, ts, D), lambda s, b: (b, s, 0))
        out_spec = pl.BlockSpec((None, ts, D), lambda s, b: (b, s, 0))
        x_in, pe_in = x, pe_s
        u_in = u if use_dropout else None
        out_shape = jax.ShapeDtypeStruct((B, S, D), x.dtype)
        dim_sem = ("parallel", "parallel")
    else:
        # Small / non-128-multiple d_model: flatten to (B, S*D) so the last dim is lane-dense.
        # Each block carries all B rows of a column tile; pe is read exactly once per tile.
        N = S * D
        tn = _choose_tile(N, B, itemsize, align=128)
        grid = (N // tn,)
        x_spec = pl.BlockSpec((B, tn), lambda n: (0, n))
        pe_spec = pl.BlockSpec((1, tn), lambda n: (0, n))
        u_spec = pl.BlockSpec((B, tn), lambda n: (0, n))
        out_spec = pl.BlockSpec((B, tn), lambda n: (0, n))
        x_in, pe_in = x.reshape(B, N), pe_s.reshape(1, N)
        u_in = u.reshape(B, N) if use_dropout else None
        out_shape = jax.ShapeDtypeStruct((B, N), x.dtype)
        dim_sem = ("parallel",)

    if use_dropout:
        kernel = functools.partial(_pe_add_dropout_kernel, float(dropout_p))
        inputs = (x_in, pe_in, u_in)
        in_specs = [x_spec, pe_spec, u_spec]
    else:
        kernel = _pe_add_kernel
        inputs = (x_in, pe_in)
        in_specs = [x_spec, pe_spec]

    out = pl.pallas_call(
        kernel,
        out_shape=out_shape,
        grid=grid,
        in_specs=in_specs,
        out_specs=out_spec,
        compiler_params=pltpu.CompilerParams(dimension_semantics=dim_sem),
    )(*inputs)
    return out.reshape(B, S, D)


if __name__ == "__main__":
    # Small, module-consistent shapes: batch=2, seq=8, d_model=32, max_len=50.
    batch, seq, d_model, max_len = 2, 8, 32, 50
    dropout_p = 0.1

    key = jax.random.PRNGKey(0)
    kx, kd = jax.random.split(key)
    x = jax.random.normal(kx, (batch, seq, d_model), dtype=jnp.float32)
    pe = make_sinusoidal_pe(max_len, d_model)

    # Eval-mode forward (dropout is identity), matching module.eval() semantics.
    out = positional_encoding_forward(x, pe, dropout_p=dropout_p, training=False)
    out = jax.block_until_ready(out)
    ref = x + pe[:seq][None, :, :]
    assert out.shape == x.shape and out.dtype == x.dtype
    assert jnp.allclose(out, ref, atol=1e-6, rtol=1e-6), "eval-mode mismatch vs reference"

    # Training-mode forward: every element is either 0 or ref * 1/(1-p).
    out_train = positional_encoding_forward(
        x, pe, dropout_p=dropout_p, training=True, rng_key=kd
    )
    out_train = jax.block_until_ready(out_train)
    scale = 1.0 / (1.0 - dropout_p)
    kept = jnp.isclose(out_train, ref * scale, atol=1e-5, rtol=1e-5)
    dropped = jnp.isclose(out_train, 0.0, atol=1e-6)
    assert bool(jnp.all(kept | dropped)), "training-mode dropout mismatch"

    # Also exercise the lane-dense 3-D path (d_model multiple of 128).
    x2 = jax.random.normal(kx, (2, 16, 128), dtype=jnp.float32)
    pe2 = make_sinusoidal_pe(max_len, 128)
    out2 = jax.block_until_ready(
        positional_encoding_forward(x2, pe2, dropout_p=dropout_p, training=False)
    )
    ref2 = x2 + pe2[:16][None, :, :]
    assert jnp.allclose(out2, ref2, atol=1e-6, rtol=1e-6), "3-D path mismatch vs reference"

    print("KERNEL_OK")
</pallas_src>

<mosaic_0001>
module attributes {stable_mosaic.version = 11 : i64} {
  func.func @_pe_add_kernel(%arg0: i32, %arg1: memref<2x256xf32, #tpu.memory_space<vmem>>, %arg2: memref<1x256xf32, #tpu.memory_space<vmem>>, %arg3: memref<2x256xf32, #tpu.memory_space<vmem>>) attributes {dimension_semantics = [#tpu.dimension_semantics<parallel>], iteration_bounds = array<i64: 1>, scalar_prefetch = 0 : i64, scratch_operands = 0 : i64, tpu.core_type = #tpu.core_type<tc>, window_params = [{transform_indices = @transform_0, window_bounds = array<i64: 2, 256>}, {transform_indices = @transform_1, window_bounds = array<i64: 1, 256>}, {transform_indices = @transform_2, window_bounds = array<i64: 2, 256>}]} {
    %c0 = arith.constant 0 : index
    %c0_0 = arith.constant 0 : index
    %0 = vector.load %arg1[%c0, %c0_0] : memref<2x256xf32, #tpu.memory_space<vmem>>, vector<2x256xf32>
    %c0_1 = arith.constant 0 : index
    %c0_2 = arith.constant 0 : index
    %1 = vector.load %arg2[%c0_1, %c0_2] : memref<1x256xf32, #tpu.memory_space<vmem>>, vector<1x256xf32>
    %2 = vector.broadcast %1 : vector<1x256xf32> to vector<2x256xf32>
    %3 = arith.addf %0, %2 : vector<2x256xf32>
    %c0_3 = arith.constant 0 : index
    %c0_4 = arith.constant 0 : index
    %4 = vector.load %arg3[%c0_3, %c0_4] : memref<2x256xf32, #tpu.memory_space<vmem>>, vector<2x256xf32>
    tpu.vector_store %arg3[%c0_3, %c0_4], %3 {strides = array<i32>} : memref<2x256xf32, #tpu.memory_space<vmem>>, vector<2x256xf32>,
    return
  }
  func.func @transform_0(%arg0: i32) -> (i32, i32) {
    %c0_i32 = arith.constant 0 : i32
    %c0_i32_0 = arith.constant 0 : i32
    return %c0_i32, %arg0 : i32, i32
  }
  func.func @transform_1(%arg0: i32) -> (i32, i32) {
    %c0_i32 = arith.constant 0 : i32
    %c0_i32_0 = arith.constant 0 : i32
    return %c0_i32, %arg0 : i32, i32
  }
  func.func @transform_2(%arg0: i32) -> (i32, i32) {
    %c0_i32 = arith.constant 0 : i32
    %c0_i32_0 = arith.constant 0 : i32
    return %c0_i32, %arg0 : i32, i32
  }
}

</mosaic_0001>

<llo_original>
// kernel: tpu_custom_call.1
$region0: #{tpu_custom_call.1}
  #allocation0 [shape = 'u32[]', space=smem, size = 0x4, offset = 0x4, fixed_abs, tag = 'smem constant byte address 0x4 - core index']
  #allocation1 [shape = 'u32[72,128]{1,0:T(1,128)}', space=vmem, size = 0x9000, scoped, tag = 'internal scratch']
  %s0 = inlined_call_operand.hbm [shape: f32[2,256], index: 0, kind: input, shape index: {}]
  %s1 = inlined_call_operand.hbm [shape: f32[1,256], index: 1, kind: input, shape index: {}]
  %s2 = inlined_call_operand.hbm [shape: f32[2,256], index: 2, kind: output, shape index: {}]
  %s3 = sld [smem:[#allocation0]]
  $region26: #{tpu_custom_call.1} parent=0
    _
  %s5 = ssub.s32 1, %s3
  %s6 = scalar_select 0, %s5, %s3
  $region1: #{tpu_custom_call.1} parent=0
    #allocation2 [shape = 'u8[2048]{0}', space=vmem, size = 0x800, scoped, tag = 'input window, operand 0, single buffered']
    #allocation3 [shape = 's32[1]{0}', space=sflag, size = 0x4, scoped, tag = 'scoped memory for tpu_custom_call.1']
    #allocation4 [shape = 's32[1]{0}', space=sflag, size = 0x4, scoped, tag = 'scoped memory for tpu_custom_call.1']
    #allocation5 [shape = 'u8[1024]{0}', space=vmem, size = 0x400, scoped, tag = 'input window, operand 1, single buffered']
    #allocation6 [shape = 's32[1]{0}', space=sflag, size = 0x4, scoped, tag = 'scoped memory for tpu_custom_call.1']
    #allocation7 [shape = 'u8[2048]{0}', space=vmem, size = 0x800, scoped, tag = 'output window, operand 0, single buffered']
    %7 = vsyncpa [#allocation3], 0
    %8 = vsyncpa [#allocation6], 0
    %9 = vsyncpa [#allocation4], 0
    // Predicated region
    $region2: #{tpu_custom_call.1} parent=1 // pred_check
      _
    $region3: #{tpu_custom_call.1} parent=1 // pred_check_branch
      %11 = sbr.rel (0) target = $region5
    $region4: #{tpu_custom_call.1} parent=1 // pred_region
      %13 = vsyncadd [#allocation3], 0
      %s15 = sshll.u32 %s0, 4
      %s16 = int_to_ptr.hbm [resolvable:$true] %s15
      %s17 = sshll.u32 [#allocation2], 4
      %s18 = int_to_ptr.vmem [resolvable:$true] %s17
      %20 = dma.hbm_to_vmem [thread:$0]  %s16, 64, %s18, [#allocation3]
    $region5: #{tpu_custom_call.1} parent=1 // pred_fallthru
      _
    // Predicated region
    $region6: #{tpu_custom_call.1} parent=1 // pred_check
      _
    $region7: #{tpu_custom_call.1} parent=1 // pred_check_branch
      %22 = sbr.rel (0) target = $region9
    $region8: #{tpu_custom_call.1} parent=1 // pred_region
      %24 = vsyncadd [#allocation6], 0
      %s26 = sshll.u32 %s1, 4
      %s27 = int_to_ptr.hbm [resolvable:$true] %s26
      %s28 = sshll.u32 [#allocation5], 4
      %s29 = int_to_ptr.vmem [resolvable:$true] %s28
      %31 = dma.hbm_to_vmem [thread:$0]  %s27, 32, %s29, [#allocation6]
    $region9: #{tpu_custom_call.1} parent=1 // pred_fallthru
      _
    // Predicated region
    $region10: #{tpu_custom_call.1} parent=1 // pred_check
      _
    $region11: #{tpu_custom_call.1} parent=1 // pred_check_branch
      %33 = sbr.rel (0) target = $region13
    $region12: #{tpu_custom_call.1} parent=1 // pred_region
      %35 = dma.done [#allocation3], 64
    $region13: #{tpu_custom_call.1} parent=1 // pred_fallthru
      _
    // Predicated region
    $region14: #{tpu_custom_call.1} parent=1 // pred_check
      _
    $region15: #{tpu_custom_call.1} parent=1 // pred_check_branch
      %37 = sbr.rel (0) target = $region17
    $region16: #{tpu_custom_call.1} parent=1 // pred_region
      %39 = dma.done [#allocation6], 32
    $region17: #{tpu_custom_call.1} parent=1 // pred_fallthru
      _
    %v40 = vld [vmem:[#allocation2] sm:$0xf]
    %v41 = vld [vmem:[#allocation5] sm:$0x3]
    %v43 = vperm.slane %v41, 0
    %v44 = vperm.slane %v41, 1
    %v45 = vrot.slane %v44, 6
    %vm46 = vcmask 1041408
    %v47 = vsel %vm46, %v43, %v45
    %v49 = vadd.f32 %v40, %v47
    %50 = vst [vmem:[#allocation7] sm:$0xf] %v49
    // Predicated region
    $region18: #{tpu_custom_call.1} parent=1 // pred_check
      _
    $region19: #{tpu_custom_call.1} parent=1 // pred_check_branch
      %52 = sbr.rel (0) target = $region21
    $region20: #{tpu_custom_call.1} parent=1 // pred_region
      %54 = vsyncadd [#allocation4], 0
      %s56 = sshll.u32 [#allocation7], 4
      %s57 = int_to_ptr.vmem [resolvable:$true] %s56
      %s58 = sshll.u32 %s2, 4
      %s59 = int_to_ptr.hbm [resolvable:$true] %s58
      %61 = dma.vmem_to_hbm [thread:$0]  %s57, 64, %s59, [#allocation4]
    $region21: #{tpu_custom_call.1} parent=1 // pred_fallthru
      _
    // Predicated region
    $region22: #{tpu_custom_call.1} parent=1 // pred_check
      _
    $region23: #{tpu_custom_call.1} parent=1 // pred_check_branch
      %63 = sbr.rel (0) target = $region25
    $region24: #{tpu_custom_call.1} parent=1 // pred_region
      %65 = dma.done [#allocation4], 64
    $region25: #{tpu_custom_call.1} parent=1 // pred_fallthru
      _
    %66 = vsyncpa [#allocation3], 1
    %67 = vsyncpa [#allocation6], 1
    %68 = vsyncpa [#allocation4], 1

</llo_original>
